<compile_context>
chip_gen: v5e
topology: v5e:2x2
jax: 0.10.0
libtpu: 0.0.40
codegen_flags: <defaults>
</compile_context>

<pallas_src>
import functools

import jax
import jax.numpy as jnp
import numpy as np
from jax.experimental import pallas as pl
from jax.experimental.pallas import tpu as pltpu


def _sigmoid(x):
    return 1.0 / (1.0 + jnp.exp(-x))


# ----------------------------- Pallas kernel --------------------------------
def decoder_step_kernel(
    x_ref, h_ref,                    # activations: (B, E), (B, H)
    wih_ref, whh_ref,                # fused gate weights: (E, 3H), (H, 3H)
    bih_ref, bhh_ref,                # fused gate biases:  (1, 3H), (1, 3H)
    wfc_ref, bfc_ref,                # classifier tile:    (H, TV), (1, TV)
    logits_ref, hout_ref,            # outputs: (B, TV), (B, H)
    h_scratch,                       # VMEM scratch: (B, H), persists over grid
    *, hidden_size,
):
    # --- GRU cell: run once, on the first vocab tile ---
    @pl.when(pl.program_id(0) == 0)
    def _():
        x = x_ref[...]                                    # (B, E)
        h = h_ref[...]                                    # (B, H)
        # fused r|z|n gate projections (one MXU matmul per side)
        gi = jnp.dot(x, wih_ref[...], preferred_element_type=jnp.float32) + bih_ref[...]
        gh = jnp.dot(h, whh_ref[...], preferred_element_type=jnp.float32) + bhh_ref[...]
        hs = hidden_size
        r = _sigmoid(gi[:, :hs] + gh[:, :hs])
        z = _sigmoid(gi[:, hs:2 * hs] + gh[:, hs:2 * hs])
        # PyTorch GRU: n = tanh(W_in x + b_in + r * (W_hn h + b_hn))
        n = jnp.tanh(gi[:, 2 * hs:] + r * gh[:, 2 * hs:])
        h_new = (1.0 - z) * n + z * h
        h_scratch[...] = h_new
        hout_ref[...] = h_new

    # --- classifier: one 128-wide vocab tile per grid step ---
    logits_ref[...] = (
        jnp.dot(h_scratch[...], wfc_ref[...], preferred_element_type=jnp.float32)
        + bfc_ref[...]
    )


def decoder_forward(token_ids, hidden, params, *, tile_v=128):
    """Pallas forward: returns (logits (B, V), new hidden (1, B, H))."""
    emb = params["embedding"][token_ids].astype(jnp.float32)   # plain-JAX gather
    h0 = hidden[0].astype(jnp.float32)                          # (B, H)

    B, E = emb.shape
    H = h0.shape[-1]
    V = params["w_fc"].shape[1]

    # pad vocab to a multiple of the lane-dense tile width
    Vp = ((V + tile_v - 1) // tile_v) * tile_v
    w_fc, b_fc = params["w_fc"], params["b_fc"]
    if Vp != V:
        w_fc = jnp.pad(w_fc, ((0, 0), (0, Vp - V)))
        b_fc = jnp.pad(b_fc, ((0, 0), (0, Vp - V)))
    num_tiles = Vp // tile_v

    full = lambda shape: pl.BlockSpec(shape, lambda j: (0, 0))

    cost = pl.CostEstimate(
        flops=2 * B * E * 3 * H + 2 * B * H * 3 * H + 2 * B * H * Vp + 12 * B * H,
        transcendentals=3 * B * H,
        bytes_accessed=4 * (B * E + B * H + E * 3 * H + H * 3 * H + 6 * H
                            + H * Vp + Vp + B * Vp + B * H),
    )

    logits, h_new = pl.pallas_call(
        functools.partial(decoder_step_kernel, hidden_size=H),
        out_shape=(
            jax.ShapeDtypeStruct((B, Vp), jnp.float32),
            jax.ShapeDtypeStruct((B, H), jnp.float32),
        ),
        grid=(num_tiles,),
        in_specs=[
            full((B, E)),                                   # embedded tokens
            full((B, H)),                                   # previous hidden
            full((E, 3 * H)), full((H, 3 * H)),             # fused gate weights
            full((1, 3 * H)), full((1, 3 * H)),             # fused gate biases
            pl.BlockSpec((H, tile_v), lambda j: (0, j)),    # classifier weight tile
            pl.BlockSpec((1, tile_v), lambda j: (0, j)),    # classifier bias tile
        ],
        out_specs=(
            pl.BlockSpec((B, tile_v), lambda j: (0, j)),    # logits tile (lane-dense)
            pl.BlockSpec((B, H), lambda j: (0, 0)),         # new hidden (written once)
        ),
        scratch_shapes=[pltpu.VMEM((B, H), jnp.float32)],
        compiler_params=pltpu.CompilerParams(dimension_semantics=("arbitrary",)),
        cost_estimate=cost,
    )(emb, h0, params["w_ih"], params["w_hh"], params["b_ih"], params["b_hh"],
      w_fc, b_fc)

    return logits[:, :V], h_new[None]                        # hidden back to (1, B, H)


# ----------------------------- pure-JAX reference ----------------------------
def reference_forward(token_ids, hidden, params):
    emb = params["embedding"][token_ids].astype(jnp.float32)
    h = hidden[0].astype(jnp.float32)
    H = h.shape[-1]
    gi = emb @ params["w_ih"] + params["b_ih"]
    gh = h @ params["w_hh"] + params["b_hh"]
    r = jax.nn.sigmoid(gi[:, :H] + gh[:, :H])
    z = jax.nn.sigmoid(gi[:, H:2 * H] + gh[:, H:2 * H])
    n = jnp.tanh(gi[:, 2 * H:] + r * gh[:, 2 * H:])
    h_new = (1.0 - z) * n + z * h
    logits = h_new @ params["w_fc"] + params["b_fc"]
    return logits, h_new[None]


# ---------------------------------- init -------------------------------------
def init_params(key, vocab, emb_size, hidden_size):
    ks = jax.random.split(key, 7)
    s = 0.1
    return dict(
        embedding=s * jax.random.normal(ks[0], (vocab, emb_size), jnp.float32),
        # fused (r|z|n) gate weights, stored transposed vs. PyTorch layout
        w_ih=s * jax.random.normal(ks[1], (emb_size, 3 * hidden_size), jnp.float32),
        w_hh=s * jax.random.normal(ks[2], (hidden_size, 3 * hidden_size), jnp.float32),
        b_ih=s * jax.random.normal(ks[3], (1, 3 * hidden_size), jnp.float32),
        b_hh=s * jax.random.normal(ks[4], (1, 3 * hidden_size), jnp.float32),
        w_fc=s * jax.random.normal(ks[5], (hidden_size, vocab), jnp.float32),
        b_fc=s * jax.random.normal(ks[6], (1, vocab), jnp.float32),
    )


# ---------------------------------- main -------------------------------------
if __name__ == "__main__":
    # small shapes consistent with Decoder(vocabulary_size, embedding_size=32, hidden_size=64)
    vocab = 256
    emb_size = 32
    hidden_size = 64
    batch = 8

    key = jax.random.PRNGKey(0)
    k_par, k_tok, k_hid = jax.random.split(key, 3)

    params = init_params(k_par, vocab, emb_size, hidden_size)
    token_ids = jax.random.randint(k_tok, (batch,), 0, vocab, dtype=jnp.int32)
    hidden = 0.1 * jax.random.normal(k_hid, (1, batch, hidden_size), jnp.float32)

    logits, h_new = decoder_forward(token_ids, hidden, params)
    logits = jax.block_until_ready(logits)
    h_new = jax.block_until_ready(h_new)

    ref_logits, ref_h = reference_forward(token_ids, hidden, params)
    np.testing.assert_allclose(np.asarray(logits), np.asarray(ref_logits),
                               rtol=1e-4, atol=1e-4)
    np.testing.assert_allclose(np.asarray(h_new), np.asarray(ref_h),
                               rtol=1e-4, atol=1e-4)

    print("KERNEL_OK")
</pallas_src>

<mosaic_0001>
module attributes {stable_mosaic.version = 11 : i64} {
  func.func @decoder_step_kernel(%arg0: i32, %arg1: memref<8x32xf32, #tpu.memory_space<vmem>>, %arg2: memref<8x64xf32, #tpu.memory_space<vmem>>, %arg3: memref<32x192xf32, #tpu.memory_space<vmem>>, %arg4: memref<64x192xf32, #tpu.memory_space<vmem>>, %arg5: memref<1x192xf32, #tpu.memory_space<vmem>>, %arg6: memref<1x192xf32, #tpu.memory_space<vmem>>, %arg7: memref<64x128xf32, #tpu.memory_space<vmem>>, %arg8: memref<1x128xf32, #tpu.memory_space<vmem>>, %arg9: memref<8x128xf32, #tpu.memory_space<vmem>>, %arg10: memref<8x64xf32, #tpu.memory_space<vmem>>, %arg11: memref<8x64xf32, #tpu.memory_space<vmem>>) attributes {dimension_semantics = [#tpu.dimension_semantics<arbitrary>], iteration_bounds = array<i64: 2>, scalar_prefetch = 0 : i64, scratch_operands = 1 : i64, tpu.core_type = #tpu.core_type<tc>, window_params = [{pipeline_mode = #tpu.pipeline_mode<synchronous>, transform_indices = @transform_0, window_bounds = array<i64: 8, 32>}, {pipeline_mode = #tpu.pipeline_mode<synchronous>, transform_indices = @transform_1, window_bounds = array<i64: 8, 64>}, {pipeline_mode = #tpu.pipeline_mode<synchronous>, transform_indices = @transform_2, window_bounds = array<i64: 32, 192>}, {pipeline_mode = #tpu.pipeline_mode<synchronous>, transform_indices = @transform_3, window_bounds = array<i64: 64, 192>}, {pipeline_mode = #tpu.pipeline_mode<synchronous>, transform_indices = @transform_4, window_bounds = array<i64: 1, 192>}, {pipeline_mode = #tpu.pipeline_mode<synchronous>, transform_indices = @transform_5, window_bounds = array<i64: 1, 192>}, {transform_indices = @transform_6, window_bounds = array<i64: 64, 128>}, {transform_indices = @transform_7, window_bounds = array<i64: 1, 128>}, {transform_indices = @transform_8, window_bounds = array<i64: 8, 128>}, {pipeline_mode = #tpu.pipeline_mode<synchronous>, transform_indices = @transform_9, window_bounds = array<i64: 8, 64>}]} {
    %c0_i32 = arith.constant 0 : i32
    %0 = arith.cmpi eq, %arg0, %c0_i32 : i32
    %1 = arith.extui %0 : i1 to i32
    %c0_i32_0 = arith.constant 0 : i32
    %2 = arith.cmpi ne, %1, %c0_i32_0 : i32
    scf.if %2 {
      %c0_8 = arith.constant 0 : index
      %c0_9 = arith.constant 0 : index
      %10 = vector.load %arg1[%c0_8, %c0_9] : memref<8x32xf32, #tpu.memory_space<vmem>>, vector<8x32xf32>
      %c0_10 = arith.constant 0 : index
      %c0_11 = arith.constant 0 : index
      %11 = vector.load %arg2[%c0_10, %c0_11] : memref<8x64xf32, #tpu.memory_space<vmem>>, vector<8x64xf32>
      %c0_12 = arith.constant 0 : index
      %c0_13 = arith.constant 0 : index
      %12 = vector.load %arg3[%c0_12, %c0_13] : memref<32x192xf32, #tpu.memory_space<vmem>>, vector<32x192xf32>
      %cst_14 = arith.constant dense<0.000000e+00> : vector<8x192xf32>
      %13 = tpu.matmul %10, %12, %cst_14 {dimension_numbers = #tpu.dot_dimension_numbers<[1], [0], [0], [1], [0, 0, 1, 1], [], []>} : vector<8x32xf32>, vector<32x192xf32>, vector<8x192xf32> -> vector<8x192xf32>
      %c0_15 = arith.constant 0 : index
      %c0_16 = arith.constant 0 : index
      %14 = vector.load %arg5[%c0_15, %c0_16] : memref<1x192xf32, #tpu.memory_space<vmem>>, vector<1x192xf32>
      %15 = vector.broadcast %14 : vector<1x192xf32> to vector<8x192xf32>
      %16 = arith.addf %13, %15 : vector<8x192xf32>
      %c0_17 = arith.constant 0 : index
      %c0_18 = arith.constant 0 : index
      %17 = vector.load %arg4[%c0_17, %c0_18] : memref<64x192xf32, #tpu.memory_space<vmem>>, vector<64x192xf32>
      %cst_19 = arith.constant dense<0.000000e+00> : vector<8x192xf32>
      %18 = tpu.matmul %11, %17, %cst_19 {dimension_numbers = #tpu.dot_dimension_numbers<[1], [0], [0], [1], [0, 0, 1, 1], [], []>} : vector<8x64xf32>, vector<64x192xf32>, vector<8x192xf32> -> vector<8x192xf32>
      %c0_20 = arith.constant 0 : index
      %c0_21 = arith.constant 0 : index
      %19 = vector.load %arg6[%c0_20, %c0_21] : memref<1x192xf32, #tpu.memory_space<vmem>>, vector<1x192xf32>
      %20 = vector.broadcast %19 : vector<1x192xf32> to vector<8x192xf32>
      %21 = arith.addf %18, %20 : vector<8x192xf32>
      %22 = vector.extract_strided_slice %16 {offsets = [0, 0], sizes = [8, 64], strides = [1, 1]} : vector<8x192xf32> to vector<8x64xf32>
      %23 = vector.extract_strided_slice %21 {offsets = [0, 0], sizes = [8, 64], strides = [1, 1]} : vector<8x192xf32> to vector<8x64xf32>
      %24 = arith.addf %22, %23 : vector<8x64xf32>
      %cst_22 = arith.constant 0.000000e+00 : f32
      %25 = vector.broadcast %cst_22 : f32 to vector<8x64xf32>
      %26 = arith.subf %25, %24 : vector<8x64xf32>
      %27 = math.exp %26 : vector<8x64xf32>
      %cst_23 = arith.constant 1.000000e+00 : f32
      %28 = vector.broadcast %cst_23 : f32 to vector<8x64xf32>
      %29 = arith.addf %28, %27 : vector<8x64xf32>
      %cst_24 = arith.constant 1.000000e+00 : f32
      %30 = vector.broadcast %cst_24 : f32 to vector<8x64xf32>
      %31 = arith.divf %30, %29 : vector<8x64xf32>
      %32 = vector.extract_strided_slice %16 {offsets = [0, 64], sizes = [8, 64], strides = [1, 1]} : vector<8x192xf32> to vector<8x64xf32>
      %33 = vector.extract_strided_slice %21 {offsets = [0, 64], sizes = [8, 64], strides = [1, 1]} : vector<8x192xf32> to vector<8x64xf32>
      %34 = arith.addf %32, %33 : vector<8x64xf32>
      %cst_25 = arith.constant 0.000000e+00 : f32
      %35 = vector.broadcast %cst_25 : f32 to vector<8x64xf32>
      %36 = arith.subf %35, %34 : vector<8x64xf32>
      %37 = math.exp %36 : vector<8x64xf32>
      %cst_26 = arith.constant 1.000000e+00 : f32
      %38 = vector.broadcast %cst_26 : f32 to vector<8x64xf32>
      %39 = arith.addf %38, %37 : vector<8x64xf32>
      %cst_27 = arith.constant 1.000000e+00 : f32
      %40 = vector.broadcast %cst_27 : f32 to vector<8x64xf32>
      %41 = arith.divf %40, %39 : vector<8x64xf32>
      %42 = vector.extract_strided_slice %16 {offsets = [0, 128], sizes = [8, 64], strides = [1, 1]} : vector<8x192xf32> to vector<8x64xf32>
      %43 = vector.extract_strided_slice %21 {offsets = [0, 128], sizes = [8, 64], strides = [1, 1]} : vector<8x192xf32> to vector<8x64xf32>
      %44 = arith.mulf %31, %43 : vector<8x64xf32>
      %45 = arith.addf %42, %44 : vector<8x64xf32>
      %46 = math.tanh %45 : vector<8x64xf32>
      %cst_28 = arith.constant 1.000000e+00 : f32
      %47 = vector.broadcast %cst_28 : f32 to vector<8x64xf32>
      %48 = arith.subf %47, %41 : vector<8x64xf32>
      %49 = arith.mulf %48, %46 : vector<8x64xf32>
      %50 = arith.mulf %41, %11 : vector<8x64xf32>
      %51 = arith.addf %49, %50 : vector<8x64xf32>
      %c0_29 = arith.constant 0 : index
      %c0_30 = arith.constant 0 : index
      %52 = vector.load %arg11[%c0_29, %c0_30] : memref<8x64xf32, #tpu.memory_space<vmem>>, vector<8x64xf32>
      tpu.vector_store %arg11[%c0_29, %c0_30], %51 {strides = array<i32>} : memref<8x64xf32, #tpu.memory_space<vmem>>, vector<8x64xf32>,
      %c0_31 = arith.constant 0 : index
      %c0_32 = arith.constant 0 : index
      %53 = vector.load %arg10[%c0_31, %c0_32] : memref<8x64xf32, #tpu.memory_space<vmem>>, vector<8x64xf32>
      tpu.vector_store %arg10[%c0_31, %c0_32], %51 {strides = array<i32>} : memref<8x64xf32, #tpu.memory_space<vmem>>, vector<8x64xf32>,
    } else {
    }
    %c0 = arith.constant 0 : index
    %c0_1 = arith.constant 0 : index
    %3 = vector.load %arg11[%c0, %c0_1] : memref<8x64xf32, #tpu.memory_space<vmem>>, vector<8x64xf32>
    %c0_2 = arith.constant 0 : index
    %c0_3 = arith.constant 0 : index
    %4 = vector.load %arg7[%c0_2, %c0_3] : memref<64x128xf32, #tpu.memory_space<vmem>>, vector<64x128xf32>
    %cst = arith.constant dense<0.000000e+00> : vector<8x128xf32>
    %5 = tpu.matmul %3, %4, %cst {dimension_numbers = #tpu.dot_dimension_numbers<[1], [0], [0], [1], [0, 0, 1, 1], [], []>} : vector<8x64xf32>, vector<64x128xf32>, vector<8x128xf32> -> vector<8x128xf32>
    %c0_4 = arith.constant 0 : index
    %c0_5 = arith.constant 0 : index
    %6 = vector.load %arg8[%c0_4, %c0_5] : memref<1x128xf32, #tpu.memory_space<vmem>>, vector<1x128xf32>
    %7 = vector.broadcast %6 : vector<1x128xf32> to vector<8x128xf32>
    %8 = arith.addf %5, %7 : vector<8x128xf32>
    %c0_6 = arith.constant 0 : index
    %c0_7 = arith.constant 0 : index
    %9 = vector.load %arg9[%c0_6, %c0_7] : memref<8x128xf32, #tpu.memory_space<vmem>>, vector<8x128xf32>
    tpu.vector_store %arg9[%c0_6, %c0_7], %8 {strides = array<i32>} : memref<8x128xf32, #tpu.memory_space<vmem>>, vector<8x128xf32>,
    return
  }
  func.func @transform_0(%arg0: i32) -> (i32, i32) {
    %c0_i32 = arith.constant 0 : i32
    %c0_i32_0 = arith.constant 0 : i32
    %c0_i32_1 = arith.constant 0 : i32
    return %c0_i32, %c0_i32_0 : i32, i32
  }
  func.func @transform_1(%arg0: i32) -> (i32, i32) {
    %c0_i32 = arith.constant 0 : i32
    %c0_i32_0 = arith.constant 0 : i32
    %c0_i32_1 = arith.constant 0 : i32
    return %c0_i32, %c0_i32_0 : i32, i32
  }
  func.func @transform_2(%arg0: i32) -> (i32, i32) {
    %c0_i32 = arith.constant 0 : i32
    %c0_i32_0 = arith.constant 0 : i32
    %c0_i32_1 = arith.constant 0 : i32
    return %c0_i32, %c0_i32_0 : i32, i32
  }
  func.func @transform_3(%arg0: i32) -> (i32, i32) {
    %c0_i32 = arith.constant 0 : i32
    %c0_i32_0 = arith.constant 0 : i32
    %c0_i32_1 = arith.constant 0 : i32
    return %c0_i32, %c0_i32_0 : i32, i32
  }
  func.func @transform_4(%arg0: i32) -> (i32, i32) {
    %c0_i32 = arith.constant 0 : i32
    %c0_i32_0 = arith.constant 0 : i32
    %c0_i32_1 = arith.constant 0 : i32
    return %c0_i32, %c0_i32_0 : i32, i32
  }
  func.func @transform_5(%arg0: i32) -> (i32, i32) {
    %c0_i32 = arith.constant 0 : i32
    %c0_i32_0 = arith.constant 0 : i32
    %c0_i32_1 = arith.constant 0 : i32
    return %c0_i32, %c0_i32_0 : i32, i32
  }
  func.func @transform_6(%arg0: i32) -> (i32, i32) {
    %c0_i32 = arith.constant 0 : i32
    %c0_i32_0 = arith.constant 0 : i32
    return %c0_i32, %arg0 : i32, i32
  }
  func.func @transform_7(%arg0: i32) -> (i32, i32) {
    %c0_i32 = arith.constant 0 : i32
    %c0_i32_0 = arith.constant 0 : i32
    return %c0_i32, %arg0 : i32, i32
  }
  func.func @transform_8(%arg0: i32) -> (i32, i32) {
    %c0_i32 = arith.constant 0 : i32
    %c0_i32_0 = arith.constant 0 : i32
    return %c0_i32, %arg0 : i32, i32
  }
  func.func @transform_9(%arg0: i32) -> (i32, i32) {
    %c0_i32 = arith.constant 0 : i32
    %c0_i32_0 = arith.constant 0 : i32
    %c0_i32_1 = arith.constant 0 : i32
    return %c0_i32, %c0_i32_0 : i32, i32
  }
}

</mosaic_0001>

<llo_original>
// kernel: tpu_custom_call.1
$region0: #{tpu_custom_call.1}
  #allocation0 [shape = 'u32[]', space=smem, size = 0x4, offset = 0x4, fixed_abs, tag = 'smem constant byte address 0x4 - core index']
  #allocation1 [shape = 'u32[72,128]{1,0:T(1,128)}', space=vmem, size = 0x9000, scoped, tag = 'internal scratch']
  #allocation2 [shape = 'f32[8,64]{1,0:T(8,128)}', space=vmem, size = 0x1000, scoped, tag = 'scratch operand']
  %s0 = inlined_call_operand.hbm [shape: f32[8,32], index: 0, kind: input, shape index: {}]
  %s1 = inlined_call_operand.hbm [shape: f32[8,64], index: 1, kind: input, shape index: {}]
  %s2 = inlined_call_operand.hbm [shape: f32[32,192], index: 2, kind: input, shape index: {}]
  %s3 = inlined_call_operand.hbm [shape: f32[64,192], index: 3, kind: input, shape index: {}]
  %s4 = inlined_call_operand.vmem [shape: f32[1,192], index: 4, kind: input, shape index: {}]
  %s5 = inlined_call_operand.vmem [shape: f32[1,192], index: 5, kind: input, shape index: {}]
  %s6 = inlined_call_operand.hbm [shape: f32[64,256], index: 6, kind: input, shape index: {}]
  %s7 = inlined_call_operand.vmem [shape: f32[1,256], index: 7, kind: input, shape index: {}]
  %s8 = inlined_call_operand.hbm [shape: f32[8,256], index: 8, kind: output, shape index: {0}]
  %s9 = inlined_call_operand.hbm [shape: f32[8,64], index: 9, kind: output, shape index: {1}]
  %10 = xla_tuple %s8, %s9
  %s11 = sld [smem:[#allocation0]]
  $region97: #{tpu_custom_call.1} parent=0
    _
  %s13 = ssub.s32 1, %s11
  %s14 = scalar_select 0, %s13, %s11
  $region1: #{tpu_custom_call.1} parent=0
    #allocation3 [shape = 'u8[4096]{0}', space=vmem, size = 0x1000, scoped, tag = 'input window, operand 0, single buffered']
    #allocation4 [shape = 's32[2]{0}', space=sflag, size = 0x8, scoped, tag = 'scoped memory for tpu_custom_call.1']
    #allocation5 [shape = 's32[2]{0}', space=sflag, size = 0x8, scoped, tag = 'scoped memory for tpu_custom_call.1']
    #allocation6 [shape = 'u8[4096]{0}', space=vmem, size = 0x1000, scoped, tag = 'input window, operand 1, single buffered']
    #allocation7 [shape = 's32[1]{0}', space=sflag, size = 0x4, scoped, tag = 'scoped memory for tpu_custom_call.1']
    #allocation8 [shape = 'u8[32768]{0}', space=vmem, size = 0x8000, scoped, tag = 'input window, operand 2, single buffered']
    #allocation9 [shape = 'u8[65536]{0}', space=vmem, size = 0x10000, scoped, tag = 'input window, operand 3, single buffered']
    #allocation10 [shape = 's32[1]{0}', space=sflag, size = 0x4, scoped, tag = 'scoped memory for tpu_custom_call.1']
    #allocation11 [shape = 'u8[65536]{0}', space=vmem, size = 0x10000, scoped, tag = 'input window, operand 6']
    #allocation12 [shape = 'u8[8192]{0}', space=vmem, size = 0x2000, scoped, tag = 'output window, operand 0']
    #allocation13 [shape = 'u8[4096]{0}', space=vmem, size = 0x1000, scoped, tag = 'output window, operand 1, single buffered']
    #allocation14 [shape = 's32[1]{0}', space=sflag, size = 0x4, scoped, tag = 'scoped memory for tpu_custom_call.1']
    %15 = vsyncpa [#allocation4], 0
    %16 = vsyncpa [#allocation7], 0
    %17 = vsyncpa [#allocation10], 0
    %18 = vsyncpa [#allocation5], 0
    %s19 = scalar_lea.sflag [#allocation5], 1
    %20 = vsyncpa %s19, 0
    %21 = vsyncpa [#allocation14], 0
    loop: start=0, step=1, limit=4
    $region2: #{tpu_custom_call.1} parent=1 // loop_pre_header
      _
    $region3: #{tpu_custom_call.1} parent=1 // loop_header
      %s23 = sphi 0, %s27
      %p24 = scmp.ge.s32.totalorder %s23, 4
      %s31 = sphi 0, %s31
      %s33 = sphi 0, %s31
      %s34 = sphi 0, %s33
      %s48 = sphi 0, %s34
      %s52 = sphi 0, %s52
      %s54 = sphi 0, %s52
      %s55 = sphi 0, %s54
      %s69 = sphi 0, %s55
      %s73 = sphi 0, %s73
      %s75 = sphi 0, %s73
      %s76 = sphi 0, %s75
      %s90 = sphi 0, %s76
      %s94 = sphi 0, %s94
      %s96 = sphi 0, %s94
      %s97 = sphi 0, %s96
      %s111 = sphi 0, %s97
      %s115 = sphi 0, %s115
      %s117 = sphi 0, %s115
      %s118 = sphi 0, %s117
      %s132 = sphi 0, %s118
      %s136 = sphi 0, %s136
      %s138 = sphi 0, %s136
      %s139 = sphi 0, %s138
      %s153 = sphi 0, %s139
      %s159 = sphi 0, %s161
      %s162 = sphi 0, %s159
      %s163 = sphi 0, %s162
      %s179 = sphi 0, %s163
      %s185 = sphi 0, %s187
      %s188 = sphi 0, %s185
      %s189 = sphi 0, %s188
      %s205 = sphi 0, %s189
      %s211 = sphi 0, %s213
      %s214 = sphi 0, %s211
      %s215 = sphi 0, %s214
      %s231 = sphi 0, %s215
      %s235 = sphi 0, %s235
      %s237 = sphi 0, %s235
      %s238 = sphi 0, %s237
      %s252 = sphi 0, %s238
    $region4: #{tpu_custom_call.1} parent=1 // loop_header_branch
      %26 = sbr.rel (%p24) target = $region8
    $region5: #{tpu_custom_call.1} parent=1 // loop_body
      %s28 = ssub.s32 %s23, 1
      %s29 = ssub.s32 %s23, 2
      %s30 = sadd.s32 %s23, 1
      %s32 = sadd.s32 %s31, 1
      %p35 = scmp.eq.s32.totalorder %s23, 1
      %p36 = scmp.ne.s32.totalorder %s31, %s33
      %p37 = scmp.eq.s32.totalorder %s23, 0
      %p38 = por %p36, %p37
      %p39 = scmp.ne.s32.totalorder %s31, %s33
      %p40 = scmp.eq.s32.totalorder %s28, 1
      %p41 = por %p39, %p40
      %p42 = scmp.ne.s32.totalorder %s33, %s34
      %p43 = scmp.eq.s32.totalorder %s28, 0
      %p44 = por %p42, %p43
      %p45 = scmp.ne.s32.totalorder %s33, %s34
      %p46 = scmp.eq.s32.totalorder %s29, 1
      %p47 = por %p45, %p46
      %p49 = scmp.ne.s32.totalorder %s34, %s48
      %p50 = scmp.eq.s32.totalorder %s29, 0
      %p51 = por %p49, %p50
      %s53 = sadd.s32 %s52, 1
      %p56 = scmp.eq.s32.totalorder %s23, 1
      %p57 = scmp.ne.s32.totalorder %s52, %s54
      %p58 = scmp.eq.s32.totalorder %s23, 0
      %p59 = por %p57, %p58
      %p60 = scmp.ne.s32.totalorder %s52, %s54
      %p61 = scmp.eq.s32.totalorder %s28, 1
      %p62 = por %p60, %p61
      %p63 = scmp.ne.s32.totalorder %s54, %s55
      %p64 = scmp.eq.s32.totalorder %s28, 0
      %p65 = por %p63, %p64
      %p66 = scmp.ne.s32.totalorder %s54, %s55
      %p67 = scmp.eq.s32.totalorder %s29, 1
      %p68 = por %p66, %p67
      %p70 = scmp.ne.s32.totalorder %s55, %s69
      %p71 = scmp.eq.s32.totalorder %s29, 0
      %p72 = por %p70, %p71
      %s74 = sadd.s32 %s73, 1
      %p77 = scmp.eq.s32.totalorder %s23, 1
      %p78 = scmp.ne.s32.totalorder %s73, %s75
      %p79 = scmp.eq.s32.totalorder %s23, 0
      %p80 = por %p78, %p79
      %p81 = scmp.ne.s32.totalorder %s73, %s75
      %p82 = scmp.eq.s32.totalorder %s28, 1
      %p83 = por %p81, %p82
      %p84 = scmp.ne.s32.totalorder %s75, %s76
      %p85 = scmp.eq.s32.totalorder %s28, 0
      %p86 = por %p84, %p85
      %p87 = scmp.ne.s32.totalorder %s75, %s76
      %p88 = scmp.eq.s32.totalorder %s29, 1
      %p89 = por %p87, %p88
      %p91 = scmp.ne.s32.totalorder %s76, %s90
      %p92 = scmp.eq.s32.totalorder %s29, 0
      %p93 = por %p91, %p92
      %s95 = sadd.s32 %s94, 1
      %p98 = scmp.eq.s32.totalorder %s23, 1
      %p99 = scmp.ne.s32.totalorder %s94, %s96
      %p100 = scmp.eq.s32.totalorder %s23, 0
      %p101 = por %p99, %p100
      %p102 = scmp.ne.s32.totalorder %s94, %s96
      %p103 = scmp.eq.s32.totalorder %s28, 1
      %p104 = por %p102, %p103
      %p105 = scmp.ne.s32.totalorder %s96, %s97
      %p106 = scmp.eq.s32.totalorder %s28, 0
      %p107 = por %p105, %p106
      %p108 = scmp.ne.s32.totalorder %s96, %s97
      %p109 = scmp.eq.s32.totalorder %s29, 1
      %p110 = por %p108, %p109
      %p112 = scmp.ne.s32.totalorder %s97, %s111
      %p113 = scmp.eq.s32.totalorder %s29, 0
      %p114 = por %p112, %p113
      %s116 = sadd.s32 %s115, 1
      %p119 = scmp.eq.s32.totalorder %s23, 1
      %p120 = scmp.ne.s32.totalorder %s115, %s117
      %p121 = scmp.eq.s32.totalorder %s23, 0
      %p122 = por %p120, %p121
      %p123 = scmp.ne.s32.totalorder %s115, %s117
      %p124 = scmp.eq.s32.totalorder %s28, 1
      %p125 = por %p123, %p124
      %p126 = scmp.ne.s32.totalorder %s117, %s118
      %p127 = scmp.eq.s32.totalorder %s28, 0
      %p128 = por %p126, %p127
      %p129 = scmp.ne.s32.totalorder %s117, %s118
      %p130 = scmp.eq.s32.totalorder %s29, 1
      %p131 = por %p129, %p130
      %p133 = scmp.ne.s32.totalorder %s118, %s132
      %p134 = scmp.eq.s32.totalorder %s29, 0
      %p135 = por %p133, %p134
      %s137 = sadd.s32 %s136, 1
      %p140 = scmp.eq.s32.totalorder %s23, 1
      %p141 = scmp.ne.s32.totalorder %s136, %s138
      %p142 = scmp.eq.s32.totalorder %s23, 0
      %p143 = por %p141, %p142
      %p144 = scmp.ne.s32.totalorder %s136, %s138
      %p145 = scmp.eq.s32.totalorder %s28, 1
      %p146 = por %p144, %p145
      %p147 = scmp.ne.s32.totalorder %s138, %s139
      %p148 = scmp.eq.s32.totalorder %s28, 0
      %p149 = por %p147, %p148
      %p150 = scmp.ne.s32.totalorder %s138, %s139
      %p151 = scmp.eq.s32.totalorder %s29, 1
      %p152 = por %p150, %p151
      %p154 = scmp.ne.s32.totalorder %s139, %s153
      %p155 = scmp.eq.s32.totalorder %s29, 0
      %p156 = por %p154, %p155
      %s157 = ssub.s32 %s23, %s30
      %p158 = scmp.eq.s32.totalorder %s157, 0
      %s160 = sadd.s32 %s159, 1
      %s161 = scalar_select %p158, %s159, %s160
      %p164 = pneg %p158
      %p165 = scmp.eq.s32.totalorder %s23, 1
      %p166 = por %p164, %p165
      %p167 = scmp.ne.s32.totalorder %s159, %s162
      %p168 = scmp.eq.s32.totalorder %s23, 0
      %p169 = por %p167, %p168
      %p170 = scmp.ne.s32.totalorder %s159, %s162
      %p171 = scmp.eq.s32.totalorder %s28, 1
      %p172 = por %p170, %p171
      %p173 = scmp.ne.s32.totalorder %s162, %s163
      %p174 = scmp.eq.s32.totalorder %s28, 0
      %p175 = por %p173, %p174
      %p176 = scmp.ne.s32.totalorder %s162, %s163
      %p177 = scmp.eq.s32.totalorder %s29, 1
      %p178 = por %p176, %p177
      %p180 = scmp.ne.s32.totalorder %s163, %s179
      %p181 = scmp.eq.s32.totalorder %s29, 0
      %p182 = por %p180, %p181
      %s183 = ssub.s32 %s23, %s30
      %p184 = scmp.eq.s32.totalorder %s183, 0
      %s186 = sadd.s32 %s185, 1
      %s187 = scalar_select %p184, %s185, %s186
      %p190 = pneg %p184
      %p191 = scmp.eq.s32.totalorder %s23, 1
      %p192 = por %p190, %p191
      %p193 = scmp.ne.s32.totalorder %s185, %s188
      %p194 = scmp.eq.s32.totalorder %s23, 0
      %p195 = por %p193, %p194
      %p196 = scmp.ne.s32.totalorder %s185, %s188
      %p197 = scmp.eq.s32.totalorder %s28, 1
      %p198 = por %p196, %p197
      %p199 = scmp.ne.s32.totalorder %s188, %s189
      %p200 = scmp.eq.s32.totalorder %s28, 0
      %p201 = por %p199, %p200
      %p202 = scmp.ne.s32.totalorder %s188, %s189
      %p203 = scmp.eq.s32.totalorder %s29, 1
      %p204 = por %p202, %p203
      %p206 = scmp.ne.s32.totalorder %s189, %s205
      %p207 = scmp.eq.s32.totalorder %s29, 0
      %p208 = por %p206, %p207
      %s209 = ssub.s32 %s23, %s30
      %p210 = scmp.eq.s32.totalorder %s209, 0
      %s212 = sadd.s32 %s211, 1
      %s213 = scalar_select %p210, %s211, %s212
      %p216 = pneg %p210
      %p217 = scmp.eq.s32.totalorder %s23, 1
      %p218 = por %p216, %p217
      %p219 = scmp.ne.s32.totalorder %s211, %s214
      %p220 = scmp.eq.s32.totalorder %s23, 0
      %p221 = por %p219, %p220
      %p222 = scmp.ne.s32.totalorder %s211, %s214
      %p223 = scmp.eq.s32.totalorder %s28, 1
      %p224 = por %p222, %p223
      %p225 = scmp.ne.s32.totalorder %s214, %s215
      %p226 = scmp.eq.s32.totalorder %s28, 0
      %p227 = por %p225, %p226
      %p228 = scmp.ne.s32.totalorder %s214, %s215
      %p229 = scmp.eq.s32.totalorder %s29, 1
      %p230 = por %p228, %p229
      %p232 = scmp.ne.s32.totalorder %s215, %s231
      %p233 = scmp.eq.s32.totalorder %s29, 0
      %p234 = por %p232, %p233
      %s236 = sadd.s32 %s235, 1
      %p239 = scmp.eq.s32.totalorder %s23, 1
      %p240 = scmp.ne.s32.totalorder %s235, %s237
      %p241 = scmp.eq.s32.totalorder %s23, 0
      %p242 = por %p240, %p241
      %p243 = scmp.ne.s32.totalorder %s235, %s237
      %p244 = scmp.eq.s32.totalorder %s28, 1
      %p245 = por %p243, %p244
      %p246 = scmp.ne.s32.totalorder %s237, %s238
      %p247 = scmp.eq.s32.totalorder %s28, 0
      %p248 = por %p246, %p247
      %p249 = scmp.ne.s32.totalorder %s237, %s238
      %p250 = scmp.eq.s32.totalorder %s29, 1
      %p251 = por %p249, %p250
      %p253 = scmp.ne.s32.totalorder %s238, %s252
      %p254 = scmp.eq.s32.totalorder %s29, 0
      %p255 = por %p253, %p254
      %p256 = scmp.le.s32.totalorder 1, %s23
      %p257 = scmp.lt.s32.totalorder %s23, 3
      %p258 = pnand %p256, %p257
      %p259 = pneg %p258
      // Predicated region
      $region9: #{tpu_custom_call.1} parent=5 // pred_check
        _
      $region10: #{tpu_custom_call.1} parent=5 // pred_check_branch
        %261 = sbr.rel (%p258) target = $region12
      $region11: #{tpu_custom_call.1} parent=5 // pred_region
        %s262 = ssub.s32 %s23, 1
        // Predicated region
        $region13: #{tpu_custom_call.1} parent=11 // pred_check
          %p263 = pneg %p44
        $region14: #{tpu_custom_call.1} parent=11 // pred_check_branch
          %265 = sbr.rel (%p263) target = $region16
        $region15: #{tpu_custom_call.1} parent=11 // pred_region
          %267 = vsyncadd [#allocation4], 0
          %s269 = sshll.u32 %s0, 4
          %s270 = int_to_ptr.hbm [resolvable:$true] %s269
          %s271 = sshll.u32 [#allocation3], 4
          %s272 = int_to_ptr.vmem [resolvable:$true] %s271
          %274 = dma.hbm_to_vmem [thread:$0]  %s270, 128, %s272, [#allocation4]
        $region16: #{tpu_custom_call.1} parent=11 // pred_fallthru
          _
        // Predicated region
        $region17: #{tpu_custom_call.1} parent=11 // pred_check
          %p275 = pneg %p65
        $region18: #{tpu_custom_call.1} parent=11 // pred_check_branch
          %277 = sbr.rel (%p275) target = $region20
        $region19: #{tpu_custom_call.1} parent=11 // pred_region
          %279 = vsyncadd [#allocation7], 0
          %s281 = sshll.u32 %s1, 4
          %s282 = int_to_ptr.hbm [resolvable:$true] %s281
          %s283 = sshll.u32 [#allocation6], 4
          %s284 = int_to_ptr.vmem [resolvable:$true] %s283
          %286 = dma.hbm_to_vmem [thread:$0]  %s282, 128, %s284, [#allocation7]
        $region20: #{tpu_custom_call.1} parent=11 // pred_fallthru
          _
        // Predicated region
        $region21: #{tpu_custom_call.1} parent=11 // pred_check
          %p287 = pneg %p86
        $region22: #{tpu_custom_call.1} parent=11 // pred_check_branch
          %289 = sbr.rel (%p287) target = $region24
        $region23: #{tpu_custom_call.1} parent=11 // pred_region
          %291 = vsyncadd [#allocation7], 0
          %s292 = sshll.u32 %s2, 4
          %s293 = int_to_ptr.hbm [resolvable:$true] %s292
          %s294 = sshll.u32 [#allocation8], 4
          %s295 = int_to_ptr.vmem [resolvable:$true] %s294
          %300 = dma.hbm_to_vmem [thread:$0]  %s293, 1024, %s295, [#allocation7], 256, 256, 16
        $region24: #{tpu_custom_call.1} parent=11 // pred_fallthru
          _
        // Predicated region
        $region25: #{tpu_custom_call.1} parent=11 // pred_check
          %p301 = pneg %p107
        $region26: #{tpu_custom_call.1} parent=11 // pred_check_branch
          %303 = sbr.rel (%p301) target = $region28
        $region27: #{tpu_custom_call.1} parent=11 // pred_region
          %305 = vsyncadd [#allocation10], 0
          %s306 = sshll.u32 %s3, 4
          %s307 = int_to_ptr.hbm [resolvable:$true] %s306
          %s308 = sshll.u32 [#allocation9], 4
          %s309 = int_to_ptr.vmem [resolvable:$true] %s308
          %314 = dma.hbm_to_vmem [thread:$0]  %s307, 2048, %s309, [#allocation10], 256, 256, 16
        $region28: #{tpu_custom_call.1} parent=11 // pred_fallthru
          _
        // Predicated region
        $region29: #{tpu_custom_call.1} parent=11 // pred_check
          %p315 = pneg %p128
        $region30: #{tpu_custom_call.1} parent=11 // pred_check_branch
          %317 = sbr.rel (%p315) target = $region32
        $region31: #{tpu_custom_call.1} parent=11 // pred_region
          _
        $region32: #{tpu_custom_call.1} parent=11 // pred_fallthru
          _
        // Predicated region
        $region33: #{tpu_custom_call.1} parent=11 // pred_check
          %p318 = pneg %p149
        $region34: #{tpu_custom_call.1} parent=11 // pred_check_branch
          %320 = sbr.rel (%p318) target = $region36
        $region35: #{tpu_custom_call.1} parent=11 // pred_region
          _
        $region36: #{tpu_custom_call.1} parent=11 // pred_fallthru
          _
      $region12: #{tpu_custom_call.1} parent=5 // pred_fallthru
        _
      %p321 = scmp.lt.s32.totalorder %s23, 2
      // Predicated region
      $region37: #{tpu_custom_call.1} parent=5 // pred_check
        %p322 = pneg %p321
      $region38: #{tpu_custom_call.1} parent=5 // pred_check_branch
        %324 = sbr.rel (%p322) target = $region40
      $region39: #{tpu_custom_call.1} parent=5 // pred_region
        // Predicated region
        $region41: #{tpu_custom_call.1} parent=39 // pred_check
          %p325 = pneg %p169
        $region42: #{tpu_custom_call.1} parent=39 // pred_check_branch
          %327 = sbr.rel (%p325) target = $region44
        $region43: #{tpu_custom_call.1} parent=39 // pred_region
          %s328 = sand.u32 %s23, 1
          %s329 = scalar_lea.sflag [#allocation4], %s328
          %s330 = sand.u32 %s159, 1
          %s331 = smul.addr %s330, 64
          %s332 = scalar_lea.vmem [#allocation11], %s331
          %334 = vsyncadd %s329, 0
          %s335 = smul.addr %s23, 8
          %s336 = scalar_lea.hbm %s6, %s335
          %s337 = sshll.u32 %s336, 4
          %s338 = int_to_ptr.hbm [resolvable:$true] %s337
          %s339 = sshll.u32 %s332, 4
          %s340 = int_to_ptr.vmem [resolvable:$true] %s339
          %345 = dma.hbm_to_vmem [thread:$0]  %s338, 1024, %s340, %s329, 256, 128, 8
        $region44: #{tpu_custom_call.1} parent=39 // pred_fallthru
          _
        // Predicated region
        $region45: #{tpu_custom_call.1} parent=39 // pred_check
          %p346 = pneg %p195
        $region46: #{tpu_custom_call.1} parent=39 // pred_check_branch
          %348 = sbr.rel (%p346) target = $region48
        $region47: #{tpu_custom_call.1} parent=39 // pred_region
          %p349 = scmp.lt.s32.totalorder %s23, 1
          %s350 = scalar_select %p349, %s23, 1
          %s351 = scalar_lea.vmem %s7, %s350
        $region48: #{tpu_custom_call.1} parent=39 // pred_fallthru
          _
      $region40: #{tpu_custom_call.1} parent=5 // pred_fallthru
        _
      %p352 = scmp.le.s32.totalorder 1, %s23
      %p353 = scmp.lt.s32.totalorder %s23, 3
      %p354 = pnand %p352, %p353
      %p355 = pneg %p354
      // Predicated region
      $region49: #{tpu_custom_call.1} parent=5 // pred_check
        _
      $region50: #{tpu_custom_call.1} parent=5 // pred_check_branch
        %357 = sbr.rel (%p354) target = $region52
      $region51: #{tpu_custom_call.1} parent=5 // pred_region
        %s358 = ssub.s32 %s23, 1
        // Predicated region
        $region53: #{tpu_custom_call.1} parent=51 // pred_check
          %p359 = pneg %p44
        $region54: #{tpu_custom_call.1} parent=51 // pred_check_branch
          %361 = sbr.rel (%p359) target = $region56
        $region55: #{tpu_custom_call.1} parent=51 // pred_region
          %363 = dma.done [#allocation4], 128
        $region56: #{tpu_custom_call.1} parent=51 // pred_fallthru
          _
        // Predicated region
        $region57: #{tpu_custom_call.1} parent=51 // pred_check
          %p364 = pneg %p65
        $region58: #{tpu_custom_call.1} parent=51 // pred_check_branch
          %366 = sbr.rel (%p364) target = $region60
        $region59: #{tpu_custom_call.1} parent=51 // pred_region
          %368 = dma.done [#allocation7], 128
        $region60: #{tpu_custom_call.1} parent=51 // pred_fallthru
          _
        // Predicated region
        $region61: #{tpu_custom_call.1} parent=51 // pred_check
          %p369 = pneg %p86
        $region62: #{tpu_custom_call.1} parent=51 // pred_check_branch
          %371 = sbr.rel (%p369) target = $region64
        $region63: #{tpu_custom_call.1} parent=51 // pred_region
          %373 = dma.done [#allocation7], 1024
        $region64: #{tpu_custom_call.1} parent=51 // pred_fallthru
          _
        // Predicated region
        $region65: #{tpu_custom_call.1} parent=51 // pred_check
          %p374 = pneg %p107
        $region66: #{tpu_custom_call.1} parent=51 // pred_check_branch
          %376 = sbr.rel (%p374) target = $region68
        $region67: #{tpu_custom_call.1} parent=51 // pred_region
          %378 = dma.done [#allocation10], 2048
        $region68: #{tpu_custom_call.1} parent=51 // pred_fallthru
          _
        %s379 = sand.u32 %s28, 1
        %s380 = scalar_lea.sflag [#allocation4], %s379
        %s381 = sand.u32 %s162, 1
        %s382 = smul.addr %s381, 64
        %s383 = scalar_lea.vmem [#allocation11], %s382
        // Predicated region
        $region69: #{tpu_custom_call.1} parent=51 // pred_check
          %p384 = pneg %p175
        $region70: #{tpu_custom_call.1} parent=51 // pred_check_branch
          %386 = sbr.rel (%p384) target = $region72
        $region71: #{tpu_custom_call.1} parent=51 // pred_region
          %388 = dma.done %s380, 1024
        $region72: #{tpu_custom_call.1} parent=51 // pred_fallthru
          _
        %p389 = pneg %p44
        %p390 = pneg %p41
        %p391 = pneg %p65
        %p392 = pneg %p62
        %p393 = pneg %p86
        %p394 = pneg %p83
        %p395 = pneg %p107
        %p396 = pneg %p104
        %p397 = pneg %p128
        %p398 = pneg %p125
        %p399 = pneg %p149
        %p400 = pneg %p146
        %s401 = sand.u32 %s28, 1
        %s402 = scalar_lea.sflag [#allocation4], %s401
        %s403 = sand.u32 %s162, 1
        %s404 = smul.addr %s403, 64
        %s405 = scalar_lea.vmem [#allocation11], %s404
        %p406 = pneg %p175
        %p407 = pneg %p172
        %p408 = scmp.lt.s32.totalorder %s28, 1
        %s409 = scalar_select %p408, %s28, 1
        %s410 = scalar_lea.vmem %s7, %s409
        %p411 = pneg %p201
        %p412 = pneg %p198
        %p413 = pneg %p227
        %p414 = pneg %p224
        %s415 = sand.u32 %s214, 1
        %s416 = scalar_lea.sflag [#allocation5], %s415
        %s417 = sand.u32 %s214, 1
        %s418 = smul.addr %s417, 8
        %s419 = scalar_lea.vmem [#allocation12], %s418
        %p420 = pneg %p248
        %p421 = pneg %p245
        %p422 = scmp.lt.s32.totalorder %s28, 1
        %s423 = scalar_select %p422, %s28, 1
        %s424 = scalar_lea.vmem %s7, %s423
        %p425 = scmp.eq.s32.totalorder %s28, 0
        // Predicated region
        $region73: #{tpu_custom_call.1} parent=51 // pred_check
          %p426 = pneg %p425
        $region74: #{tpu_custom_call.1} parent=51 // pred_check_branch
          %428 = sbr.rel (%p426) target = $region76
        $region75: #{tpu_custom_call.1} parent=51 // pred_region
          %v429 = vld [vmem:[#allocation3] sm:$0xff]
          %v430 = vld [vmem:[#allocation6] sm:$0xff]
          %v431 = vld [vmem:[#allocation8] sm:$0xff]
          %v432 = vld [vmem:[#allocation8 + $0x8] sm:$0xff]
          %v433 = vld [vmem:[#allocation8 + $0x10] sm:$0xff]
          %v434 = vld [vmem:[#allocation8 + $0x18] sm:$0xff]
          %v435 = vld [vmem:[#allocation8 + $0x20] sm:$0xff]
          %v436 = vld [vmem:[#allocation8 + $0x28] sm:$0xff]
          %v437 = vld [vmem:[#allocation8 + $0x30] sm:$0xff]
          %v438 = vld [vmem:[#allocation8 + $0x38] sm:$0xff]
          %v439 = vld [vmem:[%s4] sm:$0x3]
          %v441 = vperm.slane %v439, 0
          %v442 = vperm.slane %v439, 1
          %vm445 = vcmask 261120
          %v447 = vsel %vm445, %v429, 0
          %449 = vmatpush.msra.mxu0 0.0
          %450 = vmatpush.msra.mxu0 0.0
          %451 = vmatpush.msra.mxu0 0.0
          %452 = vmatpush.msra.mxu0 0.0
          %453 = vmatpush.msra.mxu0 0.0
          %454 = vmatpush.msra.mxu0 0.0
          %455 = vmatpush.msra.mxu0 0.0
          %456 = vmatpush.msra.mxu0 0.0
          %457 = vmatpush.msra.mxu0 0.0
          %458 = vmatpush.msra.mxu0 0.0
          %459 = vmatpush.msra.mxu0 0.0
          %460 = vmatpush.msra.mxu0 0.0
          %461 = vmatpush.msra.mxu0 %v437
          %462 = vmatpush.msra.mxu0 %v435
          %463 = vmatpush.msra.mxu0 %v433
          %464 = vmatpush.msra.mxu0 %v431
          %465 = vmatmul.f32.gmra.mxu0 %v447
          %v466 = vpop.f32.mrf.mxu0
          %v467 = vadd.f32 %v441, %v466
          %468 = vdwg.mxu0
          %469 = vmatpush.msra.mxu0 0.0
          %470 = vmatpush.msra.mxu0 0.0
          %471 = vmatpush.msra.mxu0 0.0
          %472 = vmatpush.msra.mxu0 0.0
          %473 = vmatpush.msra.mxu0 0.0
          %474 = vmatpush.msra.mxu0 0.0
          %475 = vmatpush.msra.mxu0 0.0
          %476 = vmatpush.msra.mxu0 0.0
          %477 = vmatpush.msra.mxu0 0.0
          %478 = vmatpush.msra.mxu0 0.0
          %479 = vmatpush.msra.mxu0 0.0
          %480 = vmatpush.msra.mxu0 0.0
          %481 = vmatpush.msra.mxu0 %v438
          %482 = vmatpush.msra.mxu0 %v436
          %483 = vmatpush.msra.mxu0 %v434
          %484 = vmatpush.msra.mxu0 %v432
          %485 = vmatmul.f32.gmra.mxu0 %v447
          %v486 = vpop.f32.mrf.mxu0
          %v487 = vadd.f32 %v442, %v486
          %488 = vdwg.mxu0
          %v489 = vld [vmem:[#allocation9] sm:$0xff]
          %v490 = vld [vmem:[#allocation9 + $0x8] sm:$0xff]
          %v491 = vld [vmem:[#allocation9 + $0x10] sm:$0xff]
          %v492 = vld [vmem:[#allocation9 + $0x18] sm:$0xff]
          %v493 = vld [vmem:[#allocation9 + $0x20] sm:$0xff]
          %v494 = vld [vmem:[#allocation9 + $0x28] sm:$0xff]
          %v495 = vld [vmem:[#allocation9 + $0x30] sm:$0xff]
          %v496 = vld [vmem:[#allocation9 + $0x38] sm:$0xff]
          %v497 = vld [vmem:[#allocation9 + $0x40] sm:$0xff]
          %v498 = vld [vmem:[#allocation9 + $0x48] sm:$0xff]
          %v499 = vld [vmem:[#allocation9 + $0x50] sm:$0xff]
          %v500 = vld [vmem:[#allocation9 + $0x58] sm:$0xff]
          %v501 = vld [vmem:[#allocation9 + $0x60] sm:$0xff]
          %v502 = vld [vmem:[#allocation9 + $0x68] sm:$0xff]
          %v503 = vld [vmem:[#allocation9 + $0x70] sm:$0xff]
          %v504 = vld [vmem:[#allocation9 + $0x78] sm:$0xff]
          %v505 = vld [vmem:[%s5] sm:$0x3]
          %v507 = vperm.slane %v505, 0
          %v508 = vperm.slane %v505, 1
          %vm511 = vcmask 523264
          %v513 = vsel %vm511, %v430, 0
          %515 = vmatpush.msra.mxu0 0.0
          %516 = vmatpush.msra.mxu0 0.0
          %517 = vmatpush.msra.mxu0 0.0
          %518 = vmatpush.msra.mxu0 0.0
          %519 = vmatpush.msra.mxu0 0.0
          %520 = vmatpush.msra.mxu0 0.0
          %521 = vmatpush.msra.mxu0 0.0
          %522 = vmatpush.msra.mxu0 0.0
          %523 = vmatpush.msra.mxu0 %v503
          %524 = vmatpush.msra.mxu0 %v501
          %525 = vmatpush.msra.mxu0 %v499
          %526 = vmatpush.msra.mxu0 %v497
          %527 = vmatpush.msra.mxu0 %v495
          %528 = vmatpush.msra.mxu0 %v493
          %529 = vmatpush.msra.mxu0 %v491
          %530 = vmatpush.msra.mxu0 %v489
          %531 = vmatmul.f32.gmra.mxu0 %v513
          %v532 = vpop.f32.mrf.mxu0
          %v533 = vadd.f32 %v507, %v532
          %534 = vdwg.mxu0
          %535 = vmatpush.msra.mxu0 0.0
          %536 = vmatpush.msra.mxu0 0.0
          %537 = vmatpush.msra.mxu0 0.0
          %538 = vmatpush.msra.mxu0 0.0
          %539 = vmatpush.msra.mxu0 0.0
          %540 = vmatpush.msra.mxu0 0.0
          %541 = vmatpush.msra.mxu0 0.0
          %542 = vmatpush.msra.mxu0 0.0
          %543 = vmatpush.msra.mxu0 %v504
          %544 = vmatpush.msra.mxu0 %v502
          %545 = vmatpush.msra.mxu0 %v500
          %546 = vmatpush.msra.mxu0 %v498
          %547 = vmatpush.msra.mxu0 %v496
          %548 = vmatpush.msra.mxu0 %v494
          %549 = vmatpush.msra.mxu0 %v492
          %550 = vmatpush.msra.mxu0 %v490
          %551 = vmatmul.f32.gmra.mxu0 %v513
          %v552 = vpop.f32.mrf.mxu0
          %v553 = vadd.f32 %v508, %v552
          %554 = vdwg.mxu0
          %v555 = vadd.f32 %v467, %v533
          %v556 = vsub.f32 0.0, %v555
          %v557 = vmul.f32 %v556, 1.442695
          %v558 = vpow.pop %v557
          %v559 = vadd.f32 %v558, 1.0
          %v560 = vrcp.pop %v559
          %v561 = vmul.f32 %v559, %v560
          %v562 = vsub.f32 1.0, %v561
          %v563 = vmul.f32 %v560, %v562
          %v564 = vadd.f32 %v560, %v563
          %vm565 = vweird.f32 %v559
          %vm566 = vweird.f32 %v560
          %vm567 = vmor %vm565, %vm566
          %v568 = vsel %vm567, %v560, %v564
          %v569 = vand.u32 2147483647, %v559
          %vm570 = vcmp.eq.f32.partialorder %v569, 8.507059e+37
          %v571 = vand.u32 %v559, 2147483648
          %v572 = vor.u32 1.1754944e-38, %v571
          %v573 = vsel %vm570, %v572, %v568
          %v574 = vmul.f32 1.0, %v573
          %v575 = vmul.f32 %v574, %v553
          %v576 = vadd.f32 %v487, %v575
          %v577 = vtanh.pop %v576
          %v578 = vsub.f32 1.0, %v574
          %580 = vrot.lane.b32.xlu0 %v577, 64
          %v581 = vpop.permute.xlu0 %580
          %v583 = vmul.f32 %v578, %v581
          %584 = vrot.lane.b32.xlu0 %v430, 64
          %v585 = vpop.permute.xlu0 %584
          %v587 = vmul.f32 %v574, %v585
          %v588 = vadd.f32 %v583, %v587
          %590 = vrot.lane.b32.xlu0 %v588, 64
          %v591 = vpop.permute.xlu0 %590
          %593 = vst.msk [vmem:[#allocation2] sm:$0xff] %vm511, %v591
          %594 = vst.msk [vmem:[#allocation13] sm:$0xff] %vm511, %v591
        $region76: #{tpu_custom_call.1} parent=51 // pred_fallthru
          _
        %v595 = vld [vmem:[#allocation2] sm:$0xff]
        %v596 = vld [vmem:[%s383] sm:$0xff]
        %v597 = vld [vmem:[%s383 + $0x8] sm:$0xff]
        %v598 = vld [vmem:[%s383 + $0x10] sm:$0xff]
        %v599 = vld [vmem:[%s383 + $0x18] sm:$0xff]
        %v600 = vld [vmem:[%s383 + $0x20] sm:$0xff]
        %v601 = vld [vmem:[%s383 + $0x28] sm:$0xff]
        %v602 = vld [vmem:[%s383 + $0x30] sm:$0xff]
        %v603 = vld [vmem:[%s383 + $0x38] sm:$0xff]
        %v604 = vld [vmem:[%s424] sm:$0x1]
        %v606 = vperm.slane %v604, 0
        %vm608 = vcmask 523264
        %v610 = vsel %vm608, %v595, 0
        %612 = vmatpush.msra.mxu0 0.0
        %613 = vmatpush.msra.mxu0 0.0
        %614 = vmatpush.msra.mxu0 0.0
        %615 = vmatpush.msra.mxu0 0.0
        %616 = vmatpush.msra.mxu0 0.0
        %617 = vmatpush.msra.mxu0 0.0
        %618 = vmatpush.msra.mxu0 0.0
        %619 = vmatpush.msra.mxu0 0.0
        %620 = vmatpush.msra.mxu0 %v603
        %621 = vmatpush.msra.mxu0 %v602
        %622 = vmatpush.msra.mxu0 %v601
        %623 = vmatpush.msra.mxu0 %v600
        %624 = vmatpush.msra.mxu0 %v599
        %625 = vmatpush.msra.mxu0 %v598
        %626 = vmatpush.msra.mxu0 %v597
        %627 = vmatpush.msra.mxu0 %v596
        %628 = vmatmul.f32.gmra.mxu0 %v610
        %v629 = vpop.f32.mrf.mxu0
        %v630 = vadd.f32 %v606, %v629
        %631 = vdwg.mxu0
        %632 = vst [vmem:[%s419] sm:$0xff] %v630
        %s633 = sand.u32 %s214, 1
        %s634 = scalar_lea.sflag [#allocation5], %s633
        %s635 = sand.u32 %s214, 1
        %s636 = smul.addr %s635, 8
        %s637 = scalar_lea.vmem [#allocation12], %s636
        // Predicated region
        $region77: #{tpu_custom_call.1} parent=51 // pred_check
          %p638 = pneg %p224
        $region78: #{tpu_custom_call.1} parent=51 // pred_check_branch
          %640 = sbr.rel (%p638) target = $region80
        $region79: #{tpu_custom_call.1} parent=51 // pred_region
          %642 = vsyncadd %s634, 0
          %s643 = smul.addr %s28, 8
          %s644 = scalar_lea.hbm %s8, %s643
          %s646 = sshll.u32 %s637, 4
          %s647 = int_to_ptr.vmem [resolvable:$true] %s646
          %s648 = sshll.u32 %s644, 4
          %s649 = int_to_ptr.hbm [resolvable:$true] %s648
          %651 = dma.vmem_to_hbm [thread:$0]  %s647, 128, %s649, %s634
        $region80: #{tpu_custom_call.1} parent=51 // pred_fallthru
          _
        // Predicated region
        $region81: #{tpu_custom_call.1} parent=51 // pred_check
          %p652 = pneg %p245
        $region82: #{tpu_custom_call.1} parent=51 // pred_check_branch
          %654 = sbr.rel (%p652) target = $region84
        $region83: #{tpu_custom_call.1} parent=51 // pred_region
          %656 = vsyncadd [#allocation14], 0
          %s658 = sshll.u32 [#allocation13], 4
          %s659 = int_to_ptr.vmem [resolvable:$true] %s658
          %s660 = sshll.u32 %s9, 4
          %s661 = int_to_ptr.hbm [resolvable:$true] %s660
          %663 = dma.vmem_to_hbm [thread:$0]  %s659, 128, %s661, [#allocation14]
        $region84: #{tpu_custom_call.1} parent=51 // pred_fallthru
          _
        // Predicated region
        $region85: #{tpu_custom_call.1} parent=51 // pred_check
          %p664 = pneg %p245
        $region86: #{tpu_custom_call.1} parent=51 // pred_check_branch
          %666 = sbr.rel (%p664) target = $region88
        $region87: #{tpu_custom_call.1} parent=51 // pred_region
          %668 = dma.done [#allocation14], 128
        $region88: #{tpu_custom_call.1} parent=51 // pred_fallthru
          _
      $region52: #{tpu_custom_call.1} parent=5 // pred_fallthru
        _
      %p669 = scmp.le.s32.totalorder 2, %s23
      // Predicated region
      $region89: #{tpu_custom_call.1} parent=5 // pred_check
        %p670 = pneg %p669
      $region90: #{tpu_custom_call.1} parent=5 // pred_check_branch
        %672 = sbr.rel (%p670) target = $region92
      $region91: #{tpu_custom_call.1} parent=5 // pred_region
        %s673 = ssub.s32 %s23, 2
        // Predicated region
        $region93: #{tpu_custom_call.1} parent=91 // pred_check
          %p674 = pneg %p230
        $region94: #{tpu_custom_call.1} parent=91 // pred_check_branch
          %676 = sbr.rel (%p674) target = $region96
        $region95: #{tpu_custom_call.1} parent=91 // pred_region
          %s677 = sand.u32 %s215, 1
          %s678 = scalar_lea.sflag [#allocation5], %s677
          %s679 = sand.u32 %s215, 1
          %s680 = smul.addr %s679, 8
          %s681 = scalar_lea.vmem [#allocation12], %s680
          %683 = dma.done %s678, 128
        $region96: #{tpu_custom_call.1} parent=91 // pred_fallthru
          _
      $region92: #{tpu_custom_call.1} parent=5 // pred_fallthru
        _
    $region6: #{tpu_custom_call.1} parent=1 // loop_footer
      %s27 = sadd.s32 1, %s23
    $region7: #{tpu_custom_call.1} parent=1 // loop_footer_branch
      %22 = sbr.rel target = $region3
    $region8: #{tpu_custom_call.1} parent=1 // loop_exit
      _
    %684 = vsyncpa [#allocation4], 1
    %s685 = scalar_lea.sflag [#allocation4], 1
    %686 = vsyncpa %s685, 1
    %687 = vsyncpa [#allocation7], 1
    %688 = vsyncpa [#allocation10], 1
    %689 = vsyncpa [#allocation5], 1
    %s690 = scalar_lea.sflag [#allocation5], 1
    %691 = vsyncpa %s690, 1
    %692 = vsyncpa [#allocation14], 1

</llo_original>
